<compile_context>
chip_gen: v6e
topology: v6e:2x2x1
jax: 0.10.0
libtpu: 0.0.40
codegen_flags: <defaults>
</compile_context>

<pallas_src>
import functools

import jax
import jax.numpy as jnp
import numpy as np
from jax.experimental import pallas as pl
from jax.experimental.pallas import tpu as pltpu


def _round_up(x, m):
    return ((x + m - 1) // m) * m


# ----------------------------------------------------------------------------
# Fused kernel: hyper-network decode (MXU) + per-sample 3-layer net (VPU).
# ----------------------------------------------------------------------------
def fused_actor_kernel(z_ref, state_ref,
                       w1_ref, b1_ref, w2_ref, b2_ref,
                       w3_ref, b3_ref, w4_ref, b4_ref,
                       out_ref, w_sc,
                       *, input_size, hidden_size, output_size):
    # ---- decoder: relu / relu / relu / tanh (MXU matmuls, f32 accumulate) ---
    h = jnp.dot(z_ref[...], w1_ref[...],
                preferred_element_type=jnp.float32) + b1_ref[...]
    h = jnp.maximum(h, 0.0)
    h = jnp.dot(h, w2_ref[...],
                preferred_element_type=jnp.float32) + b2_ref[...]
    h = jnp.maximum(h, 0.0)
    h = jnp.dot(h, w3_ref[...],
                preferred_element_type=jnp.float32) + b3_ref[...]
    h = jnp.maximum(h, 0.0)
    h = jnp.dot(h, w4_ref[...],
                preferred_element_type=jnp.float32) + b4_ref[...]
    # Lane-dense (TB, 512) store of the per-sample flat weight vector.
    w_sc[...] = jnp.tanh(h)

    iw1 = (input_size + 1) * hidden_size
    iw2 = iw1 + (hidden_size + 1) * hidden_size

    # ---- per-sample layer 1: out = tanh(bias_row + sum_i x_i * row_i) ------
    # (VPU multiply-accumulate; avoids B-unrolled 1xK MXU matmuls.)
    acc = w_sc[:, 0:hidden_size]                                    # bias row
    for i in range(input_size):
        col = state_ref[:, i:i + 1]                                 # (TB, 1)
        row = w_sc[:, (i + 1) * hidden_size:(i + 2) * hidden_size]  # (TB, H)
        acc = acc + col * row
    h1 = jnp.tanh(acc)

    # ---- per-sample layer 2 -------------------------------------------------
    acc = w_sc[:, iw1:iw1 + hidden_size]
    for j in range(hidden_size):
        col = h1[:, j:j + 1]
        row = w_sc[:, iw1 + (j + 1) * hidden_size:
                    iw1 + (j + 2) * hidden_size]
        acc = acc + col * row
    h2 = jnp.tanh(acc)

    # ---- per-sample layer 3 (no activation) --------------------------------
    acc = w_sc[:, iw2:iw2 + output_size]
    for j in range(hidden_size):
        col = h2[:, j:j + 1]
        row = w_sc[:, iw2 + (j + 1) * output_size:
                    iw2 + (j + 2) * output_size]
        acc = acc + col * row
    out_ref[...] = acc


@functools.partial(jax.jit, static_argnums=(3, 4, 5))
def actor_critic_forward(params, state, z, input_size, hidden_size,
                         output_size):
    """generate(z) followed by forward(state) of ActorCritic, fused."""
    b = state.shape[0]
    z_dim = z.shape[1]
    w_dim = params["fc4_w"].shape[1]
    w_pad = _round_up(w_dim, 128)          # 484 -> 512: lane-dense fc4 output

    fc4_w = params["fc4_w"]
    fc4_b = params["fc4_b"]
    if w_pad != w_dim:
        fc4_w = jnp.pad(fc4_w, ((0, 0), (0, w_pad - w_dim)))
        fc4_b = jnp.pad(fc4_b, ((0, 0), (0, w_pad - w_dim)))

    # Batch tile: multiple of 8 sublanes, capped so double-buffered per-tile
    # footprint stays tiny (<1 MiB) even on v7x's 64 MiB VMEM.
    tb = 256 if b >= 256 else _round_up(b, 8)
    b_pad = _round_up(b, tb)
    if b_pad != b:
        state = jnp.pad(state, ((0, b_pad - b), (0, 0)))
        z = jnp.pad(z, ((0, b_pad - b), (0, 0)))

    def const_spec(shape):
        # Decoder weights: same block every grid step -> stay VMEM-resident.
        return pl.BlockSpec(shape, lambda i: (0, 0))

    kernel = functools.partial(fused_actor_kernel,
                               input_size=input_size,
                               hidden_size=hidden_size,
                               output_size=output_size)

    out = pl.pallas_call(
        kernel,
        out_shape=jax.ShapeDtypeStruct((b_pad, output_size), jnp.float32),
        grid_spec=pltpu.PrefetchScalarGridSpec(
            num_scalar_prefetch=0,
            grid=(b_pad // tb,),
            in_specs=[
                pl.BlockSpec((tb, z_dim), lambda i: (i, 0)),
                pl.BlockSpec((tb, input_size), lambda i: (i, 0)),
                const_spec(params["fc1_w"].shape),
                const_spec(params["fc1_b"].shape),
                const_spec(params["fc2_w"].shape),
                const_spec(params["fc2_b"].shape),
                const_spec(params["fc3_w"].shape),
                const_spec(params["fc3_b"].shape),
                const_spec(fc4_w.shape),
                const_spec(fc4_b.shape),
            ],
            out_specs=pl.BlockSpec((tb, output_size), lambda i: (i, 0)),
            scratch_shapes=[pltpu.VMEM((tb, w_pad), jnp.float32)],
        ),
        compiler_params=pltpu.CompilerParams(
            dimension_semantics=("parallel",)),
    )(z, state,
      params["fc1_w"], params["fc1_b"],
      params["fc2_w"], params["fc2_b"],
      params["fc3_w"], params["fc3_b"],
      fc4_w, fc4_b)
    return out[:b]


# ----------------------------------------------------------------------------
# Pure-JAX reference (faithful translation of the PyTorch code) for checking.
# ----------------------------------------------------------------------------
def reference_forward(params, state, z, input_size, hidden_size, output_size):
    h = jax.nn.relu(z @ params["fc1_w"] + params["fc1_b"])
    h = jax.nn.relu(h @ params["fc2_w"] + params["fc2_b"])
    h = jax.nn.relu(h @ params["fc3_w"] + params["fc3_b"])
    w = jnp.tanh(h @ params["fc4_w"] + params["fc4_b"])

    iw1 = (input_size + 1) * hidden_size
    iw2 = iw1 + (hidden_size + 1) * hidden_size
    iw3 = iw2 + (hidden_size + 1) * output_size
    layers = ((0, iw1, (input_size + 1, hidden_size), jnp.tanh),
              (iw1, iw2, (hidden_size + 1, hidden_size), jnp.tanh),
              (iw2, iw3, (hidden_size + 1, output_size), None))

    x = state[:, None, :]
    for a, bnd, s, act in layers:
        wmat = w[:, a:bnd].reshape(-1, *s)
        ones = jnp.ones((x.shape[0], x.shape[1], 1), x.dtype)
        xc = jnp.concatenate((ones, x), axis=-1)
        x = jnp.einsum("bij,bjk->bik", xc, wmat)
        if act is not None:
            x = act(x)
    return x[:, 0, :]


# ----------------------------------------------------------------------------
if __name__ == "__main__":
    key = jax.random.PRNGKey(0)

    # Small shapes consistent with the module (Box action space, dim 4).
    batch = 8
    input_size = 8
    hidden_size = 16
    output_size = 4
    z_size = 16

    iw1 = (input_size + 1) * hidden_size
    iw2 = iw1 + (hidden_size + 1) * hidden_size
    iw3 = iw2 + (hidden_size + 1) * output_size
    w_dim = iw3  # 484

    keys = jax.random.split(key, 6)
    gain = float(np.sqrt(2.0))
    ortho = jax.nn.initializers.orthogonal(scale=gain)

    # Orthogonal(gain=sqrt(2)) weights, zero biases (as in init_).
    params = {
        "fc1_w": ortho(keys[0], (z_size, 32), jnp.float32),
        "fc1_b": jnp.zeros((1, 32), jnp.float32),
        "fc2_w": ortho(keys[1], (32, 64), jnp.float32),
        "fc2_b": jnp.zeros((1, 64), jnp.float32),
        "fc3_w": ortho(keys[2], (64, 128), jnp.float32),
        "fc3_b": jnp.zeros((1, 128), jnp.float32),
        "fc4_w": ortho(keys[3], (128, w_dim), jnp.float32),
        "fc4_b": jnp.zeros((1, w_dim), jnp.float32),
    }

    state = jax.random.normal(keys[4], (batch, input_size), jnp.float32)
    z = jax.random.normal(keys[5], (batch, z_size), jnp.float32)

    mean = actor_critic_forward(params, state, z, input_size, hidden_size,
                                output_size)
    mean = jax.block_until_ready(mean)

    ref = reference_forward(params, state, z, input_size, hidden_size,
                            output_size)
    np.testing.assert_allclose(np.asarray(mean), np.asarray(ref),
                               rtol=1e-5, atol=1e-5)
    assert mean.shape == (batch, output_size)

    print("KERNEL_OK")
</pallas_src>

<mosaic_0001>
module attributes {stable_mosaic.version = 11 : i64} {
  func.func @fused_actor_kernel(%arg0: i32, %arg1: memref<8x16xf32, #tpu.memory_space<vmem>>, %arg2: memref<8x8xf32, #tpu.memory_space<vmem>>, %arg3: memref<16x32xf32, #tpu.memory_space<vmem>>, %arg4: memref<1x32xf32, #tpu.memory_space<vmem>>, %arg5: memref<32x64xf32, #tpu.memory_space<vmem>>, %arg6: memref<1x64xf32, #tpu.memory_space<vmem>>, %arg7: memref<64x128xf32, #tpu.memory_space<vmem>>, %arg8: memref<1x128xf32, #tpu.memory_space<vmem>>, %arg9: memref<128x512xf32, #tpu.memory_space<vmem>>, %arg10: memref<1x512xf32, #tpu.memory_space<vmem>>, %arg11: memref<8x4xf32, #tpu.memory_space<vmem>>, %arg12: memref<8x512xf32, #tpu.memory_space<vmem>>) attributes {dimension_semantics = [#tpu.dimension_semantics<parallel>], iteration_bounds = array<i64: 1>, scalar_prefetch = 0 : i64, scratch_operands = 1 : i64, tpu.core_type = #tpu.core_type<tc>, window_params = [{transform_indices = @transform_0, window_bounds = array<i64: 8, 16>}, {transform_indices = @transform_1, window_bounds = array<i64: 8, 8>}, {pipeline_mode = #tpu.pipeline_mode<synchronous>, transform_indices = @transform_2, window_bounds = array<i64: 16, 32>}, {pipeline_mode = #tpu.pipeline_mode<synchronous>, transform_indices = @transform_3, window_bounds = array<i64: 1, 32>}, {pipeline_mode = #tpu.pipeline_mode<synchronous>, transform_indices = @transform_4, window_bounds = array<i64: 32, 64>}, {pipeline_mode = #tpu.pipeline_mode<synchronous>, transform_indices = @transform_5, window_bounds = array<i64: 1, 64>}, {pipeline_mode = #tpu.pipeline_mode<synchronous>, transform_indices = @transform_6, window_bounds = array<i64: 64, 128>}, {pipeline_mode = #tpu.pipeline_mode<synchronous>, transform_indices = @transform_7, window_bounds = array<i64: 1, 128>}, {pipeline_mode = #tpu.pipeline_mode<synchronous>, transform_indices = @transform_8, window_bounds = array<i64: 128, 512>}, {pipeline_mode = #tpu.pipeline_mode<synchronous>, transform_indices = @transform_9, window_bounds = array<i64: 1, 512>}, {transform_indices = @transform_10, window_bounds = array<i64: 8, 4>}]} {
    %c0 = arith.constant 0 : index
    %c0_0 = arith.constant 0 : index
    %0 = vector.load %arg1[%c0, %c0_0] : memref<8x16xf32, #tpu.memory_space<vmem>>, vector<8x16xf32>
    %c0_1 = arith.constant 0 : index
    %c0_2 = arith.constant 0 : index
    %1 = vector.load %arg3[%c0_1, %c0_2] : memref<16x32xf32, #tpu.memory_space<vmem>>, vector<16x32xf32>
    %cst = arith.constant dense<0.000000e+00> : vector<8x32xf32>
    %2 = tpu.matmul %0, %1, %cst {dimension_numbers = #tpu.dot_dimension_numbers<[1], [0], [0], [1], [0, 0, 1, 1], [], []>} : vector<8x16xf32>, vector<16x32xf32>, vector<8x32xf32> -> vector<8x32xf32>
    %c0_3 = arith.constant 0 : index
    %c0_4 = arith.constant 0 : index
    %3 = vector.load %arg4[%c0_3, %c0_4] : memref<1x32xf32, #tpu.memory_space<vmem>>, vector<1x32xf32>
    %4 = vector.broadcast %3 : vector<1x32xf32> to vector<8x32xf32>
    %5 = arith.addf %2, %4 : vector<8x32xf32>
    %cst_5 = arith.constant 0.000000e+00 : f32
    %6 = vector.broadcast %cst_5 : f32 to vector<8x32xf32>
    %7 = arith.maximumf %5, %6 : vector<8x32xf32>
    %c0_6 = arith.constant 0 : index
    %c0_7 = arith.constant 0 : index
    %8 = vector.load %arg5[%c0_6, %c0_7] : memref<32x64xf32, #tpu.memory_space<vmem>>, vector<32x64xf32>
    %cst_8 = arith.constant dense<0.000000e+00> : vector<8x64xf32>
    %9 = tpu.matmul %7, %8, %cst_8 {dimension_numbers = #tpu.dot_dimension_numbers<[1], [0], [0], [1], [0, 0, 1, 1], [], []>} : vector<8x32xf32>, vector<32x64xf32>, vector<8x64xf32> -> vector<8x64xf32>
    %c0_9 = arith.constant 0 : index
    %c0_10 = arith.constant 0 : index
    %10 = vector.load %arg6[%c0_9, %c0_10] : memref<1x64xf32, #tpu.memory_space<vmem>>, vector<1x64xf32>
    %11 = vector.broadcast %10 : vector<1x64xf32> to vector<8x64xf32>
    %12 = arith.addf %9, %11 : vector<8x64xf32>
    %cst_11 = arith.constant 0.000000e+00 : f32
    %13 = vector.broadcast %cst_11 : f32 to vector<8x64xf32>
    %14 = arith.maximumf %12, %13 : vector<8x64xf32>
    %c0_12 = arith.constant 0 : index
    %c0_13 = arith.constant 0 : index
    %15 = vector.load %arg7[%c0_12, %c0_13] : memref<64x128xf32, #tpu.memory_space<vmem>>, vector<64x128xf32>
    %cst_14 = arith.constant dense<0.000000e+00> : vector<8x128xf32>
    %16 = tpu.matmul %14, %15, %cst_14 {dimension_numbers = #tpu.dot_dimension_numbers<[1], [0], [0], [1], [0, 0, 1, 1], [], []>} : vector<8x64xf32>, vector<64x128xf32>, vector<8x128xf32> -> vector<8x128xf32>
    %c0_15 = arith.constant 0 : index
    %c0_16 = arith.constant 0 : index
    %17 = vector.load %arg8[%c0_15, %c0_16] : memref<1x128xf32, #tpu.memory_space<vmem>>, vector<1x128xf32>
    %18 = vector.broadcast %17 : vector<1x128xf32> to vector<8x128xf32>
    %19 = arith.addf %16, %18 : vector<8x128xf32>
    %cst_17 = arith.constant 0.000000e+00 : f32
    %20 = vector.broadcast %cst_17 : f32 to vector<8x128xf32>
    %21 = arith.maximumf %19, %20 : vector<8x128xf32>
    %c0_18 = arith.constant 0 : index
    %c0_19 = arith.constant 0 : index
    %22 = vector.load %arg9[%c0_18, %c0_19] : memref<128x512xf32, #tpu.memory_space<vmem>>, vector<128x512xf32>
    %cst_20 = arith.constant dense<0.000000e+00> : vector<8x512xf32>
    %23 = tpu.matmul %21, %22, %cst_20 {dimension_numbers = #tpu.dot_dimension_numbers<[1], [0], [0], [1], [0, 0, 1, 1], [], []>} : vector<8x128xf32>, vector<128x512xf32>, vector<8x512xf32> -> vector<8x512xf32>
    %c0_21 = arith.constant 0 : index
    %c0_22 = arith.constant 0 : index
    %24 = vector.load %arg10[%c0_21, %c0_22] : memref<1x512xf32, #tpu.memory_space<vmem>>, vector<1x512xf32>
    %25 = vector.broadcast %24 : vector<1x512xf32> to vector<8x512xf32>
    %26 = arith.addf %23, %25 : vector<8x512xf32>
    %27 = math.tanh %26 : vector<8x512xf32>
    %c0_23 = arith.constant 0 : index
    %c0_24 = arith.constant 0 : index
    %28 = vector.load %arg12[%c0_23, %c0_24] : memref<8x512xf32, #tpu.memory_space<vmem>>, vector<8x512xf32>
    tpu.vector_store %arg12[%c0_23, %c0_24], %27 {strides = array<i32>} : memref<8x512xf32, #tpu.memory_space<vmem>>, vector<8x512xf32>,
    %c0_25 = arith.constant 0 : index
    %c0_26 = arith.constant 0 : index
    %29 = vector.load %arg12[%c0_25, %c0_26] : memref<8x512xf32, #tpu.memory_space<vmem>>, vector<8x16xf32>
    %c0_27 = arith.constant 0 : index
    %c0_28 = arith.constant 0 : index
    %30 = vector.load %arg2[%c0_27, %c0_28] : memref<8x8xf32, #tpu.memory_space<vmem>>, vector<8x1xf32>
    %c0_29 = arith.constant 0 : index
    %c16 = arith.constant 16 : index
    %31 = vector.load %arg12[%c0_29, %c16] : memref<8x512xf32, #tpu.memory_space<vmem>>, vector<8x16xf32>
    %32 = vector.broadcast %30 : vector<8x1xf32> to vector<8x16xf32>
    %33 = arith.mulf %32, %31 : vector<8x16xf32>
    %34 = arith.addf %29, %33 : vector<8x16xf32>
    %c0_30 = arith.constant 0 : index
    %c1 = arith.constant 1 : index
    %35 = vector.load %arg2[%c0_30, %c1] : memref<8x8xf32, #tpu.memory_space<vmem>>, vector<8x1xf32>
    %c0_31 = arith.constant 0 : index
    %c32 = arith.constant 32 : index
    %36 = vector.load %arg12[%c0_31, %c32] : memref<8x512xf32, #tpu.memory_space<vmem>>, vector<8x16xf32>
    %37 = vector.broadcast %35 : vector<8x1xf32> to vector<8x16xf32>
    %38 = arith.mulf %37, %36 : vector<8x16xf32>
    %39 = arith.addf %34, %38 : vector<8x16xf32>
    %c0_32 = arith.constant 0 : index
    %c2 = arith.constant 2 : index
    %40 = vector.load %arg2[%c0_32, %c2] : memref<8x8xf32, #tpu.memory_space<vmem>>, vector<8x1xf32>
    %c0_33 = arith.constant 0 : index
    %c48 = arith.constant 48 : index
    %41 = vector.load %arg12[%c0_33, %c48] : memref<8x512xf32, #tpu.memory_space<vmem>>, vector<8x16xf32>
    %42 = vector.broadcast %40 : vector<8x1xf32> to vector<8x16xf32>
    %43 = arith.mulf %42, %41 : vector<8x16xf32>
    %44 = arith.addf %39, %43 : vector<8x16xf32>
    %c0_34 = arith.constant 0 : index
    %c3 = arith.constant 3 : index
    %45 = vector.load %arg2[%c0_34, %c3] : memref<8x8xf32, #tpu.memory_space<vmem>>, vector<8x1xf32>
    %c0_35 = arith.constant 0 : index
    %c64 = arith.constant 64 : index
    %46 = vector.load %arg12[%c0_35, %c64] : memref<8x512xf32, #tpu.memory_space<vmem>>, vector<8x16xf32>
    %47 = vector.broadcast %45 : vector<8x1xf32> to vector<8x16xf32>
    %48 = arith.mulf %47, %46 : vector<8x16xf32>
    %49 = arith.addf %44, %48 : vector<8x16xf32>
    %c0_36 = arith.constant 0 : index
    %c4 = arith.constant 4 : index
    %50 = vector.load %arg2[%c0_36, %c4] : memref<8x8xf32, #tpu.memory_space<vmem>>, vector<8x1xf32>
    %c0_37 = arith.constant 0 : index
    %c80 = arith.constant 80 : index
    %51 = vector.load %arg12[%c0_37, %c80] : memref<8x512xf32, #tpu.memory_space<vmem>>, vector<8x16xf32>
    %52 = vector.broadcast %50 : vector<8x1xf32> to vector<8x16xf32>
    %53 = arith.mulf %52, %51 : vector<8x16xf32>
    %54 = arith.addf %49, %53 : vector<8x16xf32>
    %c0_38 = arith.constant 0 : index
    %c5 = arith.constant 5 : index
    %55 = vector.load %arg2[%c0_38, %c5] : memref<8x8xf32, #tpu.memory_space<vmem>>, vector<8x1xf32>
    %c0_39 = arith.constant 0 : index
    %c96 = arith.constant 96 : index
    %56 = vector.load %arg12[%c0_39, %c96] : memref<8x512xf32, #tpu.memory_space<vmem>>, vector<8x16xf32>
    %57 = vector.broadcast %55 : vector<8x1xf32> to vector<8x16xf32>
    %58 = arith.mulf %57, %56 : vector<8x16xf32>
    %59 = arith.addf %54, %58 : vector<8x16xf32>
    %c0_40 = arith.constant 0 : index
    %c6 = arith.constant 6 : index
    %60 = vector.load %arg2[%c0_40, %c6] : memref<8x8xf32, #tpu.memory_space<vmem>>, vector<8x1xf32>
    %c0_41 = arith.constant 0 : index
    %c112 = arith.constant 112 : index
    %61 = vector.load %arg12[%c0_41, %c112] : memref<8x512xf32, #tpu.memory_space<vmem>>, vector<8x16xf32>
    %62 = vector.broadcast %60 : vector<8x1xf32> to vector<8x16xf32>
    %63 = arith.mulf %62, %61 : vector<8x16xf32>
    %64 = arith.addf %59, %63 : vector<8x16xf32>
    %c0_42 = arith.constant 0 : index
    %c7 = arith.constant 7 : index
    %65 = vector.load %arg2[%c0_42, %c7] : memref<8x8xf32, #tpu.memory_space<vmem>>, vector<8x1xf32>
    %c0_43 = arith.constant 0 : index
    %c128 = arith.constant 128 : index
    %66 = vector.load %arg12[%c0_43, %c128] : memref<8x512xf32, #tpu.memory_space<vmem>>, vector<8x16xf32>
    %67 = vector.broadcast %65 : vector<8x1xf32> to vector<8x16xf32>
    %68 = arith.mulf %67, %66 : vector<8x16xf32>
    %69 = arith.addf %64, %68 : vector<8x16xf32>
    %70 = math.tanh %69 : vector<8x16xf32>
    %c0_44 = arith.constant 0 : index
    %c144 = arith.constant 144 : index
    %71 = vector.load %arg12[%c0_44, %c144] : memref<8x512xf32, #tpu.memory_space<vmem>>, vector<8x16xf32>
    %72 = vector.extract_strided_slice %70 {offsets = [0, 0], sizes = [8, 1], strides = [1, 1]} : vector<8x16xf32> to vector<8x1xf32>
    %c0_45 = arith.constant 0 : index
    %c160 = arith.constant 160 : index
    %73 = vector.load %arg12[%c0_45, %c160] : memref<8x512xf32, #tpu.memory_space<vmem>>, vector<8x16xf32>
    %74 = vector.broadcast %72 : vector<8x1xf32> to vector<8x16xf32>
    %75 = arith.mulf %74, %73 : vector<8x16xf32>
    %76 = arith.addf %71, %75 : vector<8x16xf32>
    %77 = vector.extract_strided_slice %70 {offsets = [0, 1], sizes = [8, 1], strides = [1, 1]} : vector<8x16xf32> to vector<8x1xf32>
    %c0_46 = arith.constant 0 : index
    %c176 = arith.constant 176 : index
    %78 = vector.load %arg12[%c0_46, %c176] : memref<8x512xf32, #tpu.memory_space<vmem>>, vector<8x16xf32>
    %79 = vector.broadcast %77 : vector<8x1xf32> to vector<8x16xf32>
    %80 = arith.mulf %79, %78 : vector<8x16xf32>
    %81 = arith.addf %76, %80 : vector<8x16xf32>
    %82 = vector.extract_strided_slice %70 {offsets = [0, 2], sizes = [8, 1], strides = [1, 1]} : vector<8x16xf32> to vector<8x1xf32>
    %c0_47 = arith.constant 0 : index
    %c192 = arith.constant 192 : index
    %83 = vector.load %arg12[%c0_47, %c192] : memref<8x512xf32, #tpu.memory_space<vmem>>, vector<8x16xf32>
    %84 = vector.broadcast %82 : vector<8x1xf32> to vector<8x16xf32>
    %85 = arith.mulf %84, %83 : vector<8x16xf32>
    %86 = arith.addf %81, %85 : vector<8x16xf32>
    %87 = vector.extract_strided_slice %70 {offsets = [0, 3], sizes = [8, 1], strides = [1, 1]} : vector<8x16xf32> to vector<8x1xf32>
    %c0_48 = arith.constant 0 : index
    %c208 = arith.constant 208 : index
    %88 = vector.load %arg12[%c0_48, %c208] : memref<8x512xf32, #tpu.memory_space<vmem>>, vector<8x16xf32>
    %89 = vector.broadcast %87 : vector<8x1xf32> to vector<8x16xf32>
    %90 = arith.mulf %89, %88 : vector<8x16xf32>
    %91 = arith.addf %86, %90 : vector<8x16xf32>
    %92 = vector.extract_strided_slice %70 {offsets = [0, 4], sizes = [8, 1], strides = [1, 1]} : vector<8x16xf32> to vector<8x1xf32>
    %c0_49 = arith.constant 0 : index
    %c224 = arith.constant 224 : index
    %93 = vector.load %arg12[%c0_49, %c224] : memref<8x512xf32, #tpu.memory_space<vmem>>, vector<8x16xf32>
    %94 = vector.broadcast %92 : vector<8x1xf32> to vector<8x16xf32>
    %95 = arith.mulf %94, %93 : vector<8x16xf32>
    %96 = arith.addf %91, %95 : vector<8x16xf32>
    %97 = vector.extract_strided_slice %70 {offsets = [0, 5], sizes = [8, 1], strides = [1, 1]} : vector<8x16xf32> to vector<8x1xf32>
    %c0_50 = arith.constant 0 : index
    %c240 = arith.constant 240 : index
    %98 = vector.load %arg12[%c0_50, %c240] : memref<8x512xf32, #tpu.memory_space<vmem>>, vector<8x16xf32>
    %99 = vector.broadcast %97 : vector<8x1xf32> to vector<8x16xf32>
    %100 = arith.mulf %99, %98 : vector<8x16xf32>
    %101 = arith.addf %96, %100 : vector<8x16xf32>
    %102 = vector.extract_strided_slice %70 {offsets = [0, 6], sizes = [8, 1], strides = [1, 1]} : vector<8x16xf32> to vector<8x1xf32>
    %c0_51 = arith.constant 0 : index
    %c256 = arith.constant 256 : index
    %103 = vector.load %arg12[%c0_51, %c256] : memref<8x512xf32, #tpu.memory_space<vmem>>, vector<8x16xf32>
    %104 = vector.broadcast %102 : vector<8x1xf32> to vector<8x16xf32>
    %105 = arith.mulf %104, %103 : vector<8x16xf32>
    %106 = arith.addf %101, %105 : vector<8x16xf32>
    %107 = vector.extract_strided_slice %70 {offsets = [0, 7], sizes = [8, 1], strides = [1, 1]} : vector<8x16xf32> to vector<8x1xf32>
    %c0_52 = arith.constant 0 : index
    %c272 = arith.constant 272 : index
    %108 = vector.load %arg12[%c0_52, %c272] : memref<8x512xf32, #tpu.memory_space<vmem>>, vector<8x16xf32>
    %109 = vector.broadcast %107 : vector<8x1xf32> to vector<8x16xf32>
    %110 = arith.mulf %109, %108 : vector<8x16xf32>
    %111 = arith.addf %106, %110 : vector<8x16xf32>
    %112 = vector.extract_strided_slice %70 {offsets = [0, 8], sizes = [8, 1], strides = [1, 1]} : vector<8x16xf32> to vector<8x1xf32>
    %c0_53 = arith.constant 0 : index
    %c288 = arith.constant 288 : index
    %113 = vector.load %arg12[%c0_53, %c288] : memref<8x512xf32, #tpu.memory_space<vmem>>, vector<8x16xf32>
    %114 = vector.broadcast %112 : vector<8x1xf32> to vector<8x16xf32>
    %115 = arith.mulf %114, %113 : vector<8x16xf32>
    %116 = arith.addf %111, %115 : vector<8x16xf32>
    %117 = vector.extract_strided_slice %70 {offsets = [0, 9], sizes = [8, 1], strides = [1, 1]} : vector<8x16xf32> to vector<8x1xf32>
    %c0_54 = arith.constant 0 : index
    %c304 = arith.constant 304 : index
    %118 = vector.load %arg12[%c0_54, %c304] : memref<8x512xf32, #tpu.memory_space<vmem>>, vector<8x16xf32>
    %119 = vector.broadcast %117 : vector<8x1xf32> to vector<8x16xf32>
    %120 = arith.mulf %119, %118 : vector<8x16xf32>
    %121 = arith.addf %116, %120 : vector<8x16xf32>
    %122 = vector.extract_strided_slice %70 {offsets = [0, 10], sizes = [8, 1], strides = [1, 1]} : vector<8x16xf32> to vector<8x1xf32>
    %c0_55 = arith.constant 0 : index
    %c320 = arith.constant 320 : index
    %123 = vector.load %arg12[%c0_55, %c320] : memref<8x512xf32, #tpu.memory_space<vmem>>, vector<8x16xf32>
    %124 = vector.broadcast %122 : vector<8x1xf32> to vector<8x16xf32>
    %125 = arith.mulf %124, %123 : vector<8x16xf32>
    %126 = arith.addf %121, %125 : vector<8x16xf32>
    %127 = vector.extract_strided_slice %70 {offsets = [0, 11], sizes = [8, 1], strides = [1, 1]} : vector<8x16xf32> to vector<8x1xf32>
    %c0_56 = arith.constant 0 : index
    %c336 = arith.constant 336 : index
    %128 = vector.load %arg12[%c0_56, %c336] : memref<8x512xf32, #tpu.memory_space<vmem>>, vector<8x16xf32>
    %129 = vector.broadcast %127 : vector<8x1xf32> to vector<8x16xf32>
    %130 = arith.mulf %129, %128 : vector<8x16xf32>
    %131 = arith.addf %126, %130 : vector<8x16xf32>
    %132 = vector.extract_strided_slice %70 {offsets = [0, 12], sizes = [8, 1], strides = [1, 1]} : vector<8x16xf32> to vector<8x1xf32>
    %c0_57 = arith.constant 0 : index
    %c352 = arith.constant 352 : index
    %133 = vector.load %arg12[%c0_57, %c352] : memref<8x512xf32, #tpu.memory_space<vmem>>, vector<8x16xf32>
    %134 = vector.broadcast %132 : vector<8x1xf32> to vector<8x16xf32>
    %135 = arith.mulf %134, %133 : vector<8x16xf32>
    %136 = arith.addf %131, %135 : vector<8x16xf32>
    %137 = vector.extract_strided_slice %70 {offsets = [0, 13], sizes = [8, 1], strides = [1, 1]} : vector<8x16xf32> to vector<8x1xf32>
    %c0_58 = arith.constant 0 : index
    %c368 = arith.constant 368 : index
    %138 = vector.load %arg12[%c0_58, %c368] : memref<8x512xf32, #tpu.memory_space<vmem>>, vector<8x16xf32>
    %139 = vector.broadcast %137 : vector<8x1xf32> to vector<8x16xf32>
    %140 = arith.mulf %139, %138 : vector<8x16xf32>
    %141 = arith.addf %136, %140 : vector<8x16xf32>
    %142 = vector.extract_strided_slice %70 {offsets = [0, 14], sizes = [8, 1], strides = [1, 1]} : vector<8x16xf32> to vector<8x1xf32>
    %c0_59 = arith.constant 0 : index
    %c384 = arith.constant 384 : index
    %143 = vector.load %arg12[%c0_59, %c384] : memref<8x512xf32, #tpu.memory_space<vmem>>, vector<8x16xf32>
    %144 = vector.broadcast %142 : vector<8x1xf32> to vector<8x16xf32>
    %145 = arith.mulf %144, %143 : vector<8x16xf32>
    %146 = arith.addf %141, %145 : vector<8x16xf32>
    %147 = vector.extract_strided_slice %70 {offsets = [0, 15], sizes = [8, 1], strides = [1, 1]} : vector<8x16xf32> to vector<8x1xf32>
    %c0_60 = arith.constant 0 : index
    %c400 = arith.constant 400 : index
    %148 = vector.load %arg12[%c0_60, %c400] : memref<8x512xf32, #tpu.memory_space<vmem>>, vector<8x16xf32>
    %149 = vector.broadcast %147 : vector<8x1xf32> to vector<8x16xf32>
    %150 = arith.mulf %149, %148 : vector<8x16xf32>
    %151 = arith.addf %146, %150 : vector<8x16xf32>
    %152 = math.tanh %151 : vector<8x16xf32>
    %c0_61 = arith.constant 0 : index
    %c416 = arith.constant 416 : index
    %153 = vector.load %arg12[%c0_61, %c416] : memref<8x512xf32, #tpu.memory_space<vmem>>, vector<8x4xf32>
    %154 = vector.extract_strided_slice %152 {offsets = [0, 0], sizes = [8, 1], strides = [1, 1]} : vector<8x16xf32> to vector<8x1xf32>
    %c0_62 = arith.constant 0 : index
    %c420 = arith.constant 420 : index
    %155 = vector.load %arg12[%c0_62, %c420] : memref<8x512xf32, #tpu.memory_space<vmem>>, vector<8x4xf32>
    %156 = vector.broadcast %154 : vector<8x1xf32> to vector<8x4xf32>
    %157 = arith.mulf %156, %155 : vector<8x4xf32>
    %158 = arith.addf %153, %157 : vector<8x4xf32>
    %159 = vector.extract_strided_slice %152 {offsets = [0, 1], sizes = [8, 1], strides = [1, 1]} : vector<8x16xf32> to vector<8x1xf32>
    %c0_63 = arith.constant 0 : index
    %c424 = arith.constant 424 : index
    %160 = vector.load %arg12[%c0_63, %c424] : memref<8x512xf32, #tpu.memory_space<vmem>>, vector<8x4xf32>
    %161 = vector.broadcast %159 : vector<8x1xf32> to vector<8x4xf32>
    %162 = arith.mulf %161, %160 : vector<8x4xf32>
    %163 = arith.addf %158, %162 : vector<8x4xf32>
    %164 = vector.extract_strided_slice %152 {offsets = [0, 2], sizes = [8, 1], strides = [1, 1]} : vector<8x16xf32> to vector<8x1xf32>
    %c0_64 = arith.constant 0 : index
    %c428 = arith.constant 428 : index
    %165 = vector.load %arg12[%c0_64, %c428] : memref<8x512xf32, #tpu.memory_space<vmem>>, vector<8x4xf32>
    %166 = vector.broadcast %164 : vector<8x1xf32> to vector<8x4xf32>
    %167 = arith.mulf %166, %165 : vector<8x4xf32>
    %168 = arith.addf %163, %167 : vector<8x4xf32>
    %169 = vector.extract_strided_slice %152 {offsets = [0, 3], sizes = [8, 1], strides = [1, 1]} : vector<8x16xf32> to vector<8x1xf32>
    %c0_65 = arith.constant 0 : index
    %c432 = arith.constant 432 : index
    %170 = vector.load %arg12[%c0_65, %c432] : memref<8x512xf32, #tpu.memory_space<vmem>>, vector<8x4xf32>
    %171 = vector.broadcast %169 : vector<8x1xf32> to vector<8x4xf32>
    %172 = arith.mulf %171, %170 : vector<8x4xf32>
    %173 = arith.addf %168, %172 : vector<8x4xf32>
    %174 = vector.extract_strided_slice %152 {offsets = [0, 4], sizes = [8, 1], strides = [1, 1]} : vector<8x16xf32> to vector<8x1xf32>
    %c0_66 = arith.constant 0 : index
    %c436 = arith.constant 436 : index
    %175 = vector.load %arg12[%c0_66, %c436] : memref<8x512xf32, #tpu.memory_space<vmem>>, vector<8x4xf32>
    %176 = vector.broadcast %174 : vector<8x1xf32> to vector<8x4xf32>
    %177 = arith.mulf %176, %175 : vector<8x4xf32>
    %178 = arith.addf %173, %177 : vector<8x4xf32>
    %179 = vector.extract_strided_slice %152 {offsets = [0, 5], sizes = [8, 1], strides = [1, 1]} : vector<8x16xf32> to vector<8x1xf32>
    %c0_67 = arith.constant 0 : index
    %c440 = arith.constant 440 : index
    %180 = vector.load %arg12[%c0_67, %c440] : memref<8x512xf32, #tpu.memory_space<vmem>>, vector<8x4xf32>
    %181 = vector.broadcast %179 : vector<8x1xf32> to vector<8x4xf32>
    %182 = arith.mulf %181, %180 : vector<8x4xf32>
    %183 = arith.addf %178, %182 : vector<8x4xf32>
    %184 = vector.extract_strided_slice %152 {offsets = [0, 6], sizes = [8, 1], strides = [1, 1]} : vector<8x16xf32> to vector<8x1xf32>
    %c0_68 = arith.constant 0 : index
    %c444 = arith.constant 444 : index
    %185 = vector.load %arg12[%c0_68, %c444] : memref<8x512xf32, #tpu.memory_space<vmem>>, vector<8x4xf32>
    %186 = vector.broadcast %184 : vector<8x1xf32> to vector<8x4xf32>
    %187 = arith.mulf %186, %185 : vector<8x4xf32>
    %188 = arith.addf %183, %187 : vector<8x4xf32>
    %189 = vector.extract_strided_slice %152 {offsets = [0, 7], sizes = [8, 1], strides = [1, 1]} : vector<8x16xf32> to vector<8x1xf32>
    %c0_69 = arith.constant 0 : index
    %c448 = arith.constant 448 : index
    %190 = vector.load %arg12[%c0_69, %c448] : memref<8x512xf32, #tpu.memory_space<vmem>>, vector<8x4xf32>
    %191 = vector.broadcast %189 : vector<8x1xf32> to vector<8x4xf32>
    %192 = arith.mulf %191, %190 : vector<8x4xf32>
    %193 = arith.addf %188, %192 : vector<8x4xf32>
    %194 = vector.extract_strided_slice %152 {offsets = [0, 8], sizes = [8, 1], strides = [1, 1]} : vector<8x16xf32> to vector<8x1xf32>
    %c0_70 = arith.constant 0 : index
    %c452 = arith.constant 452 : index
    %195 = vector.load %arg12[%c0_70, %c452] : memref<8x512xf32, #tpu.memory_space<vmem>>, vector<8x4xf32>
    %196 = vector.broadcast %194 : vector<8x1xf32> to vector<8x4xf32>
    %197 = arith.mulf %196, %195 : vector<8x4xf32>
    %198 = arith.addf %193, %197 : vector<8x4xf32>
    %199 = vector.extract_strided_slice %152 {offsets = [0, 9], sizes = [8, 1], strides = [1, 1]} : vector<8x16xf32> to vector<8x1xf32>
    %c0_71 = arith.constant 0 : index
    %c456 = arith.constant 456 : index
    %200 = vector.load %arg12[%c0_71, %c456] : memref<8x512xf32, #tpu.memory_space<vmem>>, vector<8x4xf32>
    %201 = vector.broadcast %199 : vector<8x1xf32> to vector<8x4xf32>
    %202 = arith.mulf %201, %200 : vector<8x4xf32>
    %203 = arith.addf %198, %202 : vector<8x4xf32>
    %204 = vector.extract_strided_slice %152 {offsets = [0, 10], sizes = [8, 1], strides = [1, 1]} : vector<8x16xf32> to vector<8x1xf32>
    %c0_72 = arith.constant 0 : index
    %c460 = arith.constant 460 : index
    %205 = vector.load %arg12[%c0_72, %c460] : memref<8x512xf32, #tpu.memory_space<vmem>>, vector<8x4xf32>
    %206 = vector.broadcast %204 : vector<8x1xf32> to vector<8x4xf32>
    %207 = arith.mulf %206, %205 : vector<8x4xf32>
    %208 = arith.addf %203, %207 : vector<8x4xf32>
    %209 = vector.extract_strided_slice %152 {offsets = [0, 11], sizes = [8, 1], strides = [1, 1]} : vector<8x16xf32> to vector<8x1xf32>
    %c0_73 = arith.constant 0 : index
    %c464 = arith.constant 464 : index
    %210 = vector.load %arg12[%c0_73, %c464] : memref<8x512xf32, #tpu.memory_space<vmem>>, vector<8x4xf32>
    %211 = vector.broadcast %209 : vector<8x1xf32> to vector<8x4xf32>
    %212 = arith.mulf %211, %210 : vector<8x4xf32>
    %213 = arith.addf %208, %212 : vector<8x4xf32>
    %214 = vector.extract_strided_slice %152 {offsets = [0, 12], sizes = [8, 1], strides = [1, 1]} : vector<8x16xf32> to vector<8x1xf32>
    %c0_74 = arith.constant 0 : index
    %c468 = arith.constant 468 : index
    %215 = vector.load %arg12[%c0_74, %c468] : memref<8x512xf32, #tpu.memory_space<vmem>>, vector<8x4xf32>
    %216 = vector.broadcast %214 : vector<8x1xf32> to vector<8x4xf32>
    %217 = arith.mulf %216, %215 : vector<8x4xf32>
    %218 = arith.addf %213, %217 : vector<8x4xf32>
    %219 = vector.extract_strided_slice %152 {offsets = [0, 13], sizes = [8, 1], strides = [1, 1]} : vector<8x16xf32> to vector<8x1xf32>
    %c0_75 = arith.constant 0 : index
    %c472 = arith.constant 472 : index
    %220 = vector.load %arg12[%c0_75, %c472] : memref<8x512xf32, #tpu.memory_space<vmem>>, vector<8x4xf32>
    %221 = vector.broadcast %219 : vector<8x1xf32> to vector<8x4xf32>
    %222 = arith.mulf %221, %220 : vector<8x4xf32>
    %223 = arith.addf %218, %222 : vector<8x4xf32>
    %224 = vector.extract_strided_slice %152 {offsets = [0, 14], sizes = [8, 1], strides = [1, 1]} : vector<8x16xf32> to vector<8x1xf32>
    %c0_76 = arith.constant 0 : index
    %c476 = arith.constant 476 : index
    %225 = vector.load %arg12[%c0_76, %c476] : memref<8x512xf32, #tpu.memory_space<vmem>>, vector<8x4xf32>
    %226 = vector.broadcast %224 : vector<8x1xf32> to vector<8x4xf32>
    %227 = arith.mulf %226, %225 : vector<8x4xf32>
    %228 = arith.addf %223, %227 : vector<8x4xf32>
    %229 = vector.extract_strided_slice %152 {offsets = [0, 15], sizes = [8, 1], strides = [1, 1]} : vector<8x16xf32> to vector<8x1xf32>
    %c0_77 = arith.constant 0 : index
    %c480 = arith.constant 480 : index
    %230 = vector.load %arg12[%c0_77, %c480] : memref<8x512xf32, #tpu.memory_space<vmem>>, vector<8x4xf32>
    %231 = vector.broadcast %229 : vector<8x1xf32> to vector<8x4xf32>
    %232 = arith.mulf %231, %230 : vector<8x4xf32>
    %233 = arith.addf %228, %232 : vector<8x4xf32>
    %c0_78 = arith.constant 0 : index
    %c0_79 = arith.constant 0 : index
    %234 = vector.load %arg11[%c0_78, %c0_79] : memref<8x4xf32, #tpu.memory_space<vmem>>, vector<8x4xf32>
    tpu.vector_store %arg11[%c0_78, %c0_79], %233 {strides = array<i32>} : memref<8x4xf32, #tpu.memory_space<vmem>>, vector<8x4xf32>,
    return
  }
  func.func @transform_0(%arg0: i32) -> (i32, i32) {
    %c0_i32 = arith.constant 0 : i32
    %c0_i32_0 = arith.constant 0 : i32
    return %arg0, %c0_i32 : i32, i32
  }
  func.func @transform_1(%arg0: i32) -> (i32, i32) {
    %c0_i32 = arith.constant 0 : i32
    %c0_i32_0 = arith.constant 0 : i32
    return %arg0, %c0_i32 : i32, i32
  }
  func.func @transform_2(%arg0: i32) -> (i32, i32) {
    %c0_i32 = arith.constant 0 : i32
    %c0_i32_0 = arith.constant 0 : i32
    %c0_i32_1 = arith.constant 0 : i32
    return %c0_i32, %c0_i32_0 : i32, i32
  }
  func.func @transform_3(%arg0: i32) -> (i32, i32) {
    %c0_i32 = arith.constant 0 : i32
    %c0_i32_0 = arith.constant 0 : i32
    %c0_i32_1 = arith.constant 0 : i32
    return %c0_i32, %c0_i32_0 : i32, i32
  }
  func.func @transform_4(%arg0: i32) -> (i32, i32) {
    %c0_i32 = arith.constant 0 : i32
    %c0_i32_0 = arith.constant 0 : i32
    %c0_i32_1 = arith.constant 0 : i32
    return %c0_i32, %c0_i32_0 : i32, i32
  }
  func.func @transform_5(%arg0: i32) -> (i32, i32) {
    %c0_i32 = arith.constant 0 : i32
    %c0_i32_0 = arith.constant 0 : i32
    %c0_i32_1 = arith.constant 0 : i32
    return %c0_i32, %c0_i32_0 : i32, i32
  }
  func.func @transform_6(%arg0: i32) -> (i32, i32) {
    %c0_i32 = arith.constant 0 : i32
    %c0_i32_0 = arith.constant 0 : i32
    %c0_i32_1 = arith.constant 0 : i32
    return %c0_i32, %c0_i32_0 : i32, i32
  }
  func.func @transform_7(%arg0: i32) -> (i32, i32) {
    %c0_i32 = arith.constant 0 : i32
    %c0_i32_0 = arith.constant 0 : i32
    %c0_i32_1 = arith.constant 0 : i32
    return %c0_i32, %c0_i32_0 : i32, i32
  }
  func.func @transform_8(%arg0: i32) -> (i32, i32) {
    %c0_i32 = arith.constant 0 : i32
    %c0_i32_0 = arith.constant 0 : i32
    %c0_i32_1 = arith.constant 0 : i32
    return %c0_i32, %c0_i32_0 : i32, i32
  }
  func.func @transform_9(%arg0: i32) -> (i32, i32) {
    %c0_i32 = arith.constant 0 : i32
    %c0_i32_0 = arith.constant 0 : i32
    %c0_i32_1 = arith.constant 0 : i32
    return %c0_i32, %c0_i32_0 : i32, i32
  }
  func.func @transform_10(%arg0: i32) -> (i32, i32) {
    %c0_i32 = arith.constant 0 : i32
    %c0_i32_0 = arith.constant 0 : i32
    return %arg0, %c0_i32 : i32, i32
  }
}

</mosaic_0001>

<llo_original>
// kernel: actor_critic_forward.1
$region0: #{actor_critic_forward.1}
  #allocation0 [shape = 'u32[]', space=smem, size = 0x4, offset = 0x4, fixed_abs, tag = 'smem constant byte address 0x4 - core index']
  #allocation1 [shape = 'u32[144,128]{1,0:T(1,128)}', space=vmem, size = 0x12000, scoped, tag = 'internal scratch']
  #allocation2 [shape = 'f32[8,512]{1,0:T(8,128)}', space=vmem, size = 0x4000, scoped, tag = 'scratch operand']
  %s0 = inlined_call_operand.vmem [shape: f32[8,16], index: 0, kind: input, shape index: {}]
  %s1 = inlined_call_operand.vmem [shape: f32[8,8], index: 1, kind: input, shape index: {}]
  %s2 = inlined_call_operand.vmem [shape: f32[16,32], index: 2, kind: input, shape index: {}]
  %s3 = inlined_call_operand.vmem [shape: f32[1,32], index: 3, kind: input, shape index: {}]
  %s4 = inlined_call_operand.vmem [shape: f32[32,64], index: 4, kind: input, shape index: {}]
  %s5 = inlined_call_operand.vmem [shape: f32[1,64], index: 5, kind: input, shape index: {}]
  %s6 = inlined_call_operand.vmem [shape: f32[64,128], index: 6, kind: input, shape index: {}]
  %s7 = inlined_call_operand.vmem [shape: f32[1,128], index: 7, kind: input, shape index: {}]
  %s8 = inlined_call_operand.vmem [shape: f32[128,512], index: 8, kind: input, shape index: {}]
  %s9 = inlined_call_operand.vmem [shape: f32[1,512], index: 9, kind: input, shape index: {}]
  %s10 = inlined_call_operand.vmem [shape: f32[8,4], index: 10, kind: output, shape index: {}]
  %s11 = sld [smem:[#allocation0]]
  $region50: #{actor_critic_forward.1} parent=0
    _
  %s13 = ssub.s32 1, %s11
  %s14 = scalar_select 0, %s13, %s11
  // Predicated region
  $region2: #{actor_critic_forward.1} parent=0 // pred_check
    _
  $region3: #{actor_critic_forward.1} parent=0 // pred_check_branch
    %16 = sbr.rel (0) target = $region5
  $region4: #{actor_critic_forward.1} parent=0 // pred_region
    _
  $region5: #{actor_critic_forward.1} parent=0 // pred_fallthru
    _
  // Predicated region
  $region6: #{actor_critic_forward.1} parent=0 // pred_check
    _
  $region7: #{actor_critic_forward.1} parent=0 // pred_check_branch
    %18 = sbr.rel (0) target = $region9
  $region8: #{actor_critic_forward.1} parent=0 // pred_region
    _
  $region9: #{actor_critic_forward.1} parent=0 // pred_fallthru
    _
  // Predicated region
  $region10: #{actor_critic_forward.1} parent=0 // pred_check
    _
  $region11: #{actor_critic_forward.1} parent=0 // pred_check_branch
    %20 = sbr.rel (0) target = $region13
  $region12: #{actor_critic_forward.1} parent=0 // pred_region
    _
  $region13: #{actor_critic_forward.1} parent=0 // pred_fallthru
    _
  // Predicated region
  $region14: #{actor_critic_forward.1} parent=0 // pred_check
    _
  $region15: #{actor_critic_forward.1} parent=0 // pred_check_branch
    %22 = sbr.rel (0) target = $region17
  $region16: #{actor_critic_forward.1} parent=0 // pred_region
    _
  $region17: #{actor_critic_forward.1} parent=0 // pred_fallthru
    _
  // Predicated region
  $region18: #{actor_critic_forward.1} parent=0 // pred_check
    _
  $region19: #{actor_critic_forward.1} parent=0 // pred_check_branch
    %24 = sbr.rel (0) target = $region21
  $region20: #{actor_critic_forward.1} parent=0 // pred_region
    _
  $region21: #{actor_critic_forward.1} parent=0 // pred_fallthru
    _
  // Predicated region
  $region22: #{actor_critic_forward.1} parent=0 // pred_check
    _
  $region23: #{actor_critic_forward.1} parent=0 // pred_check_branch
    %26 = sbr.rel (0) target = $region25
  $region24: #{actor_critic_forward.1} parent=0 // pred_region
    _
  $region25: #{actor_critic_forward.1} parent=0 // pred_fallthru
    _
  // Predicated region
  $region26: #{actor_critic_forward.1} parent=0 // pred_check
    _
  $region27: #{actor_critic_forward.1} parent=0 // pred_check_branch
    %28 = sbr.rel (0) target = $region29
  $region28: #{actor_critic_forward.1} parent=0 // pred_region
    _
  $region29: #{actor_critic_forward.1} parent=0 // pred_fallthru
    _
  // Predicated region
  $region30: #{actor_critic_forward.1} parent=0 // pred_check
    _
  $region31: #{actor_critic_forward.1} parent=0 // pred_check_branch
    %30 = sbr.rel (0) target = $region33
  $region32: #{actor_critic_forward.1} parent=0 // pred_region
    _
  $region33: #{actor_critic_forward.1} parent=0 // pred_fallthru
    _
  // Predicated region
  $region34: #{actor_critic_forward.1} parent=0 // pred_check
    _
  $region35: #{actor_critic_forward.1} parent=0 // pred_check_branch
    %32 = sbr.rel (0) target = $region37
  $region36: #{actor_critic_forward.1} parent=0 // pred_region
    _
  $region37: #{actor_critic_forward.1} parent=0 // pred_fallthru
    _
  // Predicated region
  $region38: #{actor_critic_forward.1} parent=0 // pred_check
    _
  $region39: #{actor_critic_forward.1} parent=0 // pred_check_branch
    %34 = sbr.rel (0) target = $region41
  $region40: #{actor_critic_forward.1} parent=0 // pred_region
    _
  $region41: #{actor_critic_forward.1} parent=0 // pred_fallthru
    _
  %v35 = vld [vmem:[%s0] sm:$0xff]
  %v36 = vld [vmem:[%s2] sm:$0xff]
  %v37 = vld [vmem:[%s2 + $0x8] sm:$0xff]
  %v38 = vld [vmem:[%s3] sm:$0x1]
  %v40 = vlaneseq
  %v41 = vshrl.u32 %v40, 7
  %v42 = vsub.s32 0, %v41
  %v43 = vrot.slane %v38, %v42
  %vm45 = vcmask 130048
  %v47 = vsel %vm45, %v35, 0
  %49 = vmatprep.subr.mxu0 0.0
  %50 = vmatpush1.msra.mxu0 0.0
  %51 = vmatprep.subr.mxu0 0.0
  %52 = vmatpush1.msra.mxu0 0.0
  %53 = vmatprep.subr.mxu0 0.0
  %54 = vmatpush1.msra.mxu0 0.0
  %55 = vmatprep.subr.mxu0 0.0
  %56 = vmatpush1.msra.mxu0 0.0
  %57 = vmatprep.subr.mxu0 0.0
  %58 = vmatpush1.msra.mxu0 0.0
  %59 = vmatprep.subr.mxu0 0.0
  %60 = vmatpush1.msra.mxu0 0.0
  %61 = vmatprep.subr.mxu0 0.0
  %62 = vmatpush1.msra.mxu0 0.0
  %63 = vmatprep.subr.mxu0 0.0
  %64 = vmatpush1.msra.mxu0 0.0
  %65 = vmatprep.subr.mxu0 0.0
  %66 = vmatpush1.msra.mxu0 0.0
  %67 = vmatprep.subr.mxu0 0.0
  %68 = vmatpush1.msra.mxu0 0.0
  %69 = vmatprep.subr.mxu0 0.0
  %70 = vmatpush1.msra.mxu0 0.0
  %71 = vmatprep.subr.mxu0 0.0
  %72 = vmatpush1.msra.mxu0 0.0
  %73 = vmatprep.subr.mxu0 0.0
  %74 = vmatpush1.msra.mxu0 0.0
  %75 = vmatprep.subr.mxu0 0.0
  %76 = vmatpush1.msra.mxu0 0.0
  %77 = vmatprep.subr.mxu0 0.0
  %78 = vmatpush1.msra.mxu0 %v37
  %79 = vmatprep.subr.mxu0 0.0
  %80 = vmatpush1.msra.mxu0 %v36
  %81 = vmatprep.subr.mxu0 0.0
  %82 = vmatpush2.msra.mxu0 0.0
  %83 = vmatprep.subr.mxu0 0.0
  %84 = vmatpush2.msra.mxu0 0.0
  %85 = vmatprep.subr.mxu0 0.0
  %86 = vmatpush2.msra.mxu0 0.0
  %87 = vmatprep.subr.mxu0 0.0
  %88 = vmatpush2.msra.mxu0 0.0
  %89 = vmatprep.subr.mxu0 0.0
  %90 = vmatpush2.msra.mxu0 0.0
  %91 = vmatprep.subr.mxu0 0.0
  %92 = vmatpush2.msra.mxu0 0.0
  %93 = vmatprep.subr.mxu0 0.0
  %94 = vmatpush2.msra.mxu0 0.0
  %95 = vmatprep.subr.mxu0 0.0
  %96 = vmatpush2.msra.mxu0 0.0
  %97 = vmatprep.subr.mxu0 0.0
  %98 = vmatpush2.msra.mxu0 0.0
  %99 = vmatprep.subr.mxu0 0.0
  %100 = vmatpush2.msra.mxu0 0.0
  %101 = vmatprep.subr.mxu0 0.0
  %102 = vmatpush2.msra.mxu0 0.0
  %103 = vmatprep.subr.mxu0 0.0
  %104 = vmatpush2.msra.mxu0 0.0
  %105 = vmatprep.subr.mxu0 0.0
  %106 = vmatpush2.msra.mxu0 0.0
  %107 = vmatprep.subr.mxu0 0.0
  %108 = vmatpush2.msra.mxu0 0.0
  %109 = vmatprep.subr.mxu0 0.0
  %110 = vmatpush2.msra.mxu0 0.0
  %111 = vmatprep.subr.mxu0 0.0
  %112 = vmatpush2.msra.mxu0 0.0
  %113 = vmatprep.mubr.f32.mxu0 0.0
  %114 = vmatmul.mubr.f32.gmra.mxu0 %v47
  %v115 = vpop.f32.mrf.mxu0
  %v116 = vadd.f32 %v43, %v115
  %v117 = vpop.f32.mrf.mxu0
  %118 = vdwg.mxu0
  %v119 = vmax.f32 %v116, 0.0
  %v120 = vld [vmem:[%s4] sm:$0xff]
  %v121 = vld [vmem:[%s4 + $0x8] sm:$0xff]
  %v122 = vld [vmem:[%s4 + $0x10] sm:$0xff]
  %v123 = vld [vmem:[%s4 + $0x18] sm:$0xff]
  %v124 = vld [vmem:[%s5] sm:$0x1]
  %v126 = vlaneseq
  %v127 = vshrl.u32 %v126, 7
  %v128 = vsub.s32 0, %v127
  %v129 = vrot.slane %v124, %v128
  %vm131 = vcmask 261120
  %v133 = vsel %vm131, %v119, 0
  %135 = vmatprep.subr.mxu0 0.0
  %136 = vmatpush1.msra.mxu0 0.0
  %137 = vmatprep.subr.mxu0 0.0
  %138 = vmatpush1.msra.mxu0 0.0
  %139 = vmatprep.subr.mxu0 0.0
  %140 = vmatpush1.msra.mxu0 0.0
  %141 = vmatprep.subr.mxu0 0.0
  %142 = vmatpush1.msra.mxu0 0.0
  %143 = vmatprep.subr.mxu0 0.0
  %144 = vmatpush1.msra.mxu0 0.0
  %145 = vmatprep.subr.mxu0 0.0
  %146 = vmatpush1.msra.mxu0 0.0
  %147 = vmatprep.subr.mxu0 0.0
  %148 = vmatpush1.msra.mxu0 0.0
  %149 = vmatprep.subr.mxu0 0.0
  %150 = vmatpush1.msra.mxu0 0.0
  %151 = vmatprep.subr.mxu0 0.0
  %152 = vmatpush1.msra.mxu0 0.0
  %153 = vmatprep.subr.mxu0 0.0
  %154 = vmatpush1.msra.mxu0 0.0
  %155 = vmatprep.subr.mxu0 0.0
  %156 = vmatpush1.msra.mxu0 0.0
  %157 = vmatprep.subr.mxu0 0.0
  %158 = vmatpush1.msra.mxu0 0.0
  %159 = vmatprep.subr.mxu0 0.0
  %160 = vmatpush1.msra.mxu0 %v123
  %161 = vmatprep.subr.mxu0 0.0
  %162 = vmatpush1.msra.mxu0 %v122
  %163 = vmatprep.subr.mxu0 0.0
  %164 = vmatpush1.msra.mxu0 %v121
  %165 = vmatprep.subr.mxu0 0.0
  %166 = vmatpush1.msra.mxu0 %v120
  %167 = vmatprep.subr.mxu0 0.0
  %168 = vmatpush2.msra.mxu0 0.0
  %169 = vmatprep.subr.mxu0 0.0
  %170 = vmatpush2.msra.mxu0 0.0
  %171 = vmatprep.subr.mxu0 0.0
  %172 = vmatpush2.msra.mxu0 0.0
  %173 = vmatprep.subr.mxu0 0.0
  %174 = vmatpush2.msra.mxu0 0.0
  %175 = vmatprep.subr.mxu0 0.0
  %176 = vmatpush2.msra.mxu0 0.0
  %177 = vmatprep.subr.mxu0 0.0
  %178 = vmatpush2.msra.mxu0 0.0
  %179 = vmatprep.subr.mxu0 0.0
  %180 = vmatpush2.msra.mxu0 0.0
  %181 = vmatprep.subr.mxu0 0.0
  %182 = vmatpush2.msra.mxu0 0.0
  %183 = vmatprep.subr.mxu0 0.0
  %184 = vmatpush2.msra.mxu0 0.0
  %185 = vmatprep.subr.mxu0 0.0
  %186 = vmatpush2.msra.mxu0 0.0
  %187 = vmatprep.subr.mxu0 0.0
  %188 = vmatpush2.msra.mxu0 0.0
  %189 = vmatprep.subr.mxu0 0.0
  %190 = vmatpush2.msra.mxu0 0.0
  %191 = vmatprep.subr.mxu0 0.0
  %192 = vmatpush2.msra.mxu0 0.0
  %193 = vmatprep.subr.mxu0 0.0
  %194 = vmatpush2.msra.mxu0 0.0
  %195 = vmatprep.subr.mxu0 0.0
  %196 = vmatpush2.msra.mxu0 0.0
  %197 = vmatprep.subr.mxu0 0.0
  %198 = vmatpush2.msra.mxu0 0.0
  %199 = vmatprep.mubr.f32.mxu0 0.0
  %200 = vmatmul.mubr.f32.gmra.mxu0 %v133
  %v201 = vpop.f32.mrf.mxu0
  %v202 = vadd.f32 %v129, %v201
  %v203 = vpop.f32.mrf.mxu0
  %204 = vdwg.mxu0
  %v205 = vmax.f32 %v202, 0.0
  %v206 = vld [vmem:[%s6] sm:$0xff]
  %v207 = vld [vmem:[%s6 + $0x8] sm:$0xff]
  %v208 = vld [vmem:[%s6 + $0x10] sm:$0xff]
  %v209 = vld [vmem:[%s6 + $0x18] sm:$0xff]
  %v210 = vld [vmem:[%s6 + $0x20] sm:$0xff]
  %v211 = vld [vmem:[%s6 + $0x28] sm:$0xff]
  %v212 = vld [vmem:[%s6 + $0x30] sm:$0xff]
  %v213 = vld [vmem:[%s6 + $0x38] sm:$0xff]
  %v214 = vld [vmem:[%s7] sm:$0x1]
  %v216 = vlaneseq
  %v217 = vshrl.u32 %v216, 7
  %v218 = vsub.s32 0, %v217
  %v219 = vrot.slane %v214, %v218
  %vm221 = vcmask 523264
  %v223 = vsel %vm221, %v205, 0
  %225 = vmatprep.subr.mxu0 0.0
  %226 = vmatpush1.msra.mxu0 0.0
  %227 = vmatprep.subr.mxu0 0.0
  %228 = vmatpush1.msra.mxu0 0.0
  %229 = vmatprep.subr.mxu0 0.0
  %230 = vmatpush1.msra.mxu0 0.0
  %231 = vmatprep.subr.mxu0 0.0
  %232 = vmatpush1.msra.mxu0 0.0
  %233 = vmatprep.subr.mxu0 0.0
  %234 = vmatpush1.msra.mxu0 0.0
  %235 = vmatprep.subr.mxu0 0.0
  %236 = vmatpush1.msra.mxu0 0.0
  %237 = vmatprep.subr.mxu0 0.0
  %238 = vmatpush1.msra.mxu0 0.0
  %239 = vmatprep.subr.mxu0 0.0
  %240 = vmatpush1.msra.mxu0 0.0
  %241 = vmatprep.subr.mxu0 0.0
  %242 = vmatpush1.msra.mxu0 %v213
  %243 = vmatprep.subr.mxu0 0.0
  %244 = vmatpush1.msra.mxu0 %v212
  %245 = vmatprep.subr.mxu0 0.0
  %246 = vmatpush1.msra.mxu0 %v211
  %247 = vmatprep.subr.mxu0 0.0
  %248 = vmatpush1.msra.mxu0 %v210
  %249 = vmatprep.subr.mxu0 0.0
  %250 = vmatpush1.msra.mxu0 %v209
  %251 = vmatprep.subr.mxu0 0.0
  %252 = vmatpush1.msra.mxu0 %v208
  %253 = vmatprep.subr.mxu0 0.0
  %254 = vmatpush1.msra.mxu0 %v207
  %255 = vmatprep.subr.mxu0 0.0
  %256 = vmatpush1.msra.mxu0 %v206
  %257 = vmatprep.subr.mxu0 0.0
  %258 = vmatpush2.msra.mxu0 0.0
  %259 = vmatprep.subr.mxu0 0.0
  %260 = vmatpush2.msra.mxu0 0.0
  %261 = vmatprep.subr.mxu0 0.0
  %262 = vmatpush2.msra.mxu0 0.0
  %263 = vmatprep.subr.mxu0 0.0
  %264 = vmatpush2.msra.mxu0 0.0
  %265 = vmatprep.subr.mxu0 0.0
  %266 = vmatpush2.msra.mxu0 0.0
  %267 = vmatprep.subr.mxu0 0.0
  %268 = vmatpush2.msra.mxu0 0.0
  %269 = vmatprep.subr.mxu0 0.0
  %270 = vmatpush2.msra.mxu0 0.0
  %271 = vmatprep.subr.mxu0 0.0
  %272 = vmatpush2.msra.mxu0 0.0
  %273 = vmatprep.subr.mxu0 0.0
  %274 = vmatpush2.msra.mxu0 0.0
  %275 = vmatprep.subr.mxu0 0.0
  %276 = vmatpush2.msra.mxu0 0.0
  %277 = vmatprep.subr.mxu0 0.0
  %278 = vmatpush2.msra.mxu0 0.0
  %279 = vmatprep.subr.mxu0 0.0
  %280 = vmatpush2.msra.mxu0 0.0
  %281 = vmatprep.subr.mxu0 0.0
  %282 = vmatpush2.msra.mxu0 0.0
  %283 = vmatprep.subr.mxu0 0.0
  %284 = vmatpush2.msra.mxu0 0.0
  %285 = vmatprep.subr.mxu0 0.0
  %286 = vmatpush2.msra.mxu0 0.0
  %287 = vmatprep.subr.mxu0 0.0
  %288 = vmatpush2.msra.mxu0 0.0
  %289 = vmatprep.mubr.f32.mxu0 0.0
  %290 = vmatmul.mubr.f32.gmra.mxu0 %v223
  %v291 = vpop.f32.mrf.mxu0
  %v292 = vadd.f32 %v219, %v291
  %v293 = vpop.f32.mrf.mxu0
  %294 = vdwg.mxu0
  %v295 = vmax.f32 %v292, 0.0
  %v296 = vld [vmem:[%s8] sm:$0xff]
  %v297 = vld [vmem:[%s8 + $0x8] sm:$0xff]
  %v298 = vld [vmem:[%s8 + $0x10] sm:$0xff]
  %v299 = vld [vmem:[%s8 + $0x18] sm:$0xff]
  %v300 = vld [vmem:[%s8 + $0x20] sm:$0xff]
  %v301 = vld [vmem:[%s8 + $0x28] sm:$0xff]
  %v302 = vld [vmem:[%s8 + $0x30] sm:$0xff]
  %v303 = vld [vmem:[%s8 + $0x38] sm:$0xff]
  %v304 = vld [vmem:[%s8 + $0x40] sm:$0xff]
  %v305 = vld [vmem:[%s8 + $0x48] sm:$0xff]
  %v306 = vld [vmem:[%s8 + $0x50] sm:$0xff]
  %v307 = vld [vmem:[%s8 + $0x58] sm:$0xff]
  %v308 = vld [vmem:[%s8 + $0x60] sm:$0xff]
  %v309 = vld [vmem:[%s8 + $0x68] sm:$0xff]
  %v310 = vld [vmem:[%s8 + $0x70] sm:$0xff]
  %v311 = vld [vmem:[%s8 + $0x78] sm:$0xff]
  %v312 = vld [vmem:[%s8 + $0x80] sm:$0xff]
  %v313 = vld [vmem:[%s8 + $0x88] sm:$0xff]
  %v314 = vld [vmem:[%s8 + $0x90] sm:$0xff]
  %v315 = vld [vmem:[%s8 + $0x98] sm:$0xff]
  %v316 = vld [vmem:[%s8 + $0xa0] sm:$0xff]
  %v317 = vld [vmem:[%s8 + $0xa8] sm:$0xff]
  %v318 = vld [vmem:[%s8 + $0xb0] sm:$0xff]
  %v319 = vld [vmem:[%s8 + $0xb8] sm:$0xff]
  %v320 = vld [vmem:[%s8 + $0xc0] sm:$0xff]
  %v321 = vld [vmem:[%s8 + $0xc8] sm:$0xff]
  %v322 = vld [vmem:[%s8 + $0xd0] sm:$0xff]
  %v323 = vld [vmem:[%s8 + $0xd8] sm:$0xff]
  %v324 = vld [vmem:[%s8 + $0xe0] sm:$0xff]
  %v325 = vld [vmem:[%s8 + $0xe8] sm:$0xff]
  %v326 = vld [vmem:[%s8 + $0xf0] sm:$0xff]
  %v327 = vld [vmem:[%s8 + $0xf8] sm:$0xff]
  %v328 = vld [vmem:[%s8 + $0x100] sm:$0xff]
  %v329 = vld [vmem:[%s8 + $0x108] sm:$0xff]
  %v330 = vld [vmem:[%s8 + $0x110] sm:$0xff]
  %v331 = vld [vmem:[%s8 + $0x118] sm:$0xff]
  %v332 = vld [vmem:[%s8 + $0x120] sm:$0xff]
  %v333 = vld [vmem:[%s8 + $0x128] sm:$0xff]
  %v334 = vld [vmem:[%s8 + $0x130] sm:$0xff]
  %v335 = vld [vmem:[%s8 + $0x138] sm:$0xff]
  %v336 = vld [vmem:[%s8 + $0x140] sm:$0xff]
  %v337 = vld [vmem:[%s8 + $0x148] sm:$0xff]
  %v338 = vld [vmem:[%s8 + $0x150] sm:$0xff]
  %v339 = vld [vmem:[%s8 + $0x158] sm:$0xff]
  %v340 = vld [vmem:[%s8 + $0x160] sm:$0xff]
  %v341 = vld [vmem:[%s8 + $0x168] sm:$0xff]
  %v342 = vld [vmem:[%s8 + $0x170] sm:$0xff]
  %v343 = vld [vmem:[%s8 + $0x178] sm:$0xff]
  %v344 = vld [vmem:[%s8 + $0x180] sm:$0xff]
  %v345 = vld [vmem:[%s8 + $0x188] sm:$0xff]
  %v346 = vld [vmem:[%s8 + $0x190] sm:$0xff]
  %v347 = vld [vmem:[%s8 + $0x198] sm:$0xff]
  %v348 = vld [vmem:[%s8 + $0x1a0] sm:$0xff]
  %v349 = vld [vmem:[%s8 + $0x1a8] sm:$0xff]
  %v350 = vld [vmem:[%s8 + $0x1b0] sm:$0xff]
  %v351 = vld [vmem:[%s8 + $0x1b8] sm:$0xff]
  %v352 = vld [vmem:[%s8 + $0x1c0] sm:$0xff]
  %v353 = vld [vmem:[%s8 + $0x1c8] sm:$0xff]
  %v354 = vld [vmem:[%s8 + $0x1d0] sm:$0xff]
  %v355 = vld [vmem:[%s8 + $0x1d8] sm:$0xff]
  %v356 = vld [vmem:[%s8 + $0x1e0] sm:$0xff]
  %v357 = vld [vmem:[%s8 + $0x1e8] sm:$0xff]
  %v358 = vld [vmem:[%s8 + $0x1f0] sm:$0xff]
  %v359 = vld [vmem:[%s8 + $0x1f8] sm:$0xff]
  %v360 = vld [vmem:[%s9] sm:$0xf]
  %v362 = vlaneseq
  %v363 = vshrl.u32 %v362, 7
  %v364 = vsub.s32 0, %v363
  %v365 = vrot.slane %v360, %v364
  %v366 = vlaneseq
  %v367 = vshrl.u32 %v366, 7
  %v368 = vsub.s32 1, %v367
  %v369 = vrot.slane %v360, %v368
  %v370 = vlaneseq
  %v371 = vshrl.u32 %v370, 7
  %v372 = vsub.s32 2, %v371
  %v373 = vrot.slane %v360, %v372
  %v374 = vlaneseq
  %v375 = vshrl.u32 %v374, 7
  %v376 = vsub.s32 3, %v375
  %v377 = vrot.slane %v360, %v376
  %382 = vmatprep.subr.mxu0 %v357
  %383 = vmatpush1.msra.mxu0 %v356
  %384 = vmatprep.subr.mxu0 %v353
  %385 = vmatpush1.msra.mxu0 %v352
  %386 = vmatprep.subr.mxu0 %v349
  %387 = vmatpush1.msra.mxu0 %v348
  %388 = vmatprep.subr.mxu0 %v345
  %389 = vmatpush1.msra.mxu0 %v344
  %390 = vmatprep.subr.mxu0 %v341
  %391 = vmatpush1.msra.mxu0 %v340
  %392 = vmatprep.subr.mxu0 %v337
  %393 = vmatpush1.msra.mxu0 %v336
  %394 = vmatprep.subr.mxu0 %v333
  %395 = vmatpush1.msra.mxu0 %v332
  %396 = vmatprep.subr.mxu0 %v329
  %397 = vmatpush1.msra.mxu0 %v328
  %398 = vmatprep.subr.mxu0 %v325
  %399 = vmatpush1.msra.mxu0 %v324
  %400 = vmatprep.subr.mxu0 %v321
  %401 = vmatpush1.msra.mxu0 %v320
  %402 = vmatprep.subr.mxu0 %v317
  %403 = vmatpush1.msra.mxu0 %v316
  %404 = vmatprep.subr.mxu0 %v313
  %405 = vmatpush1.msra.mxu0 %v312
  %406 = vmatprep.subr.mxu0 %v309
  %407 = vmatpush1.msra.mxu0 %v308
  %408 = vmatprep.subr.mxu0 %v305
  %409 = vmatpush1.msra.mxu0 %v304
  %410 = vmatprep.subr.mxu0 %v301
  %411 = vmatpush1.msra.mxu0 %v300
  %412 = vmatprep.subr.mxu0 %v297
  %413 = vmatpush1.msra.mxu0 %v296
  %414 = vmatprep.subr.mxu0 0.0
  %415 = vmatpush2.msra.mxu0 0.0
  %416 = vmatprep.subr.mxu0 0.0
  %417 = vmatpush2.msra.mxu0 0.0
  %418 = vmatprep.subr.mxu0 0.0
  %419 = vmatpush2.msra.mxu0 0.0
  %420 = vmatprep.subr.mxu0 0.0
  %421 = vmatpush2.msra.mxu0 0.0
  %422 = vmatprep.subr.mxu0 0.0
  %423 = vmatpush2.msra.mxu0 0.0
  %424 = vmatprep.subr.mxu0 0.0
  %425 = vmatpush2.msra.mxu0 0.0
  %426 = vmatprep.subr.mxu0 0.0
  %427 = vmatpush2.msra.mxu0 0.0
  %428 = vmatprep.subr.mxu0 0.0
  %429 = vmatpush2.msra.mxu0 0.0
  %430 = vmatprep.subr.mxu0 0.0
  %431 = vmatpush2.msra.mxu0 0.0
  %432 = vmatprep.subr.mxu0 0.0
  %433 = vmatpush2.msra.mxu0 0.0
  %434 = vmatprep.subr.mxu0 0.0
  %435 = vmatpush2.msra.mxu0 0.0
  %436 = vmatprep.subr.mxu0 0.0
  %437 = vmatpush2.msra.mxu0 0.0
  %438 = vmatprep.subr.mxu0 0.0
  %439 = vmatpush2.msra.mxu0 0.0
  %440 = vmatprep.subr.mxu0 0.0
  %441 = vmatpush2.msra.mxu0 0.0
  %442 = vmatprep.subr.mxu0 0.0
  %443 = vmatpush2.msra.mxu0 0.0
  %444 = vmatprep.subr.mxu0 0.0
  %445 = vmatpush2.msra.mxu0 0.0
  %446 = vmatprep.mubr.f32.mxu0 0.0
  %447 = vmatmul.mubr.f32.gmra.mxu0 %v295
  %v448 = vpop.f32.mrf.mxu0
  %v449 = vadd.f32 %v365, %v448
  %v450 = vpop.f32.mrf.mxu0
  %v451 = vadd.f32 %v369, %v450
  %452 = vdwg.mxu0
  %453 = vmatprep.subr.mxu0 %v359
  %454 = vmatpush1.msra.mxu0 %v358
  %455 = vmatprep.subr.mxu0 %v355
  %456 = vmatpush1.msra.mxu0 %v354
  %457 = vmatprep.subr.mxu0 %v351
  %458 = vmatpush1.msra.mxu0 %v350
  %459 = vmatprep.subr.mxu0 %v347
  %460 = vmatpush1.msra.mxu0 %v346
  %461 = vmatprep.subr.mxu0 %v343
  %462 = vmatpush1.msra.mxu0 %v342
  %463 = vmatprep.subr.mxu0 %v339
  %464 = vmatpush1.msra.mxu0 %v338
  %465 = vmatprep.subr.mxu0 %v335
  %466 = vmatpush1.msra.mxu0 %v334
  %467 = vmatprep.subr.mxu0 %v331
  %468 = vmatpush1.msra.mxu0 %v330
  %469 = vmatprep.subr.mxu0 %v327
  %470 = vmatpush1.msra.mxu0 %v326
  %471 = vmatprep.subr.mxu0 %v323
  %472 = vmatpush1.msra.mxu0 %v322
  %473 = vmatprep.subr.mxu0 %v319
  %474 = vmatpush1.msra.mxu0 %v318
  %475 = vmatprep.subr.mxu0 %v315
  %476 = vmatpush1.msra.mxu0 %v314
  %477 = vmatprep.subr.mxu0 %v311
  %478 = vmatpush1.msra.mxu0 %v310
  %479 = vmatprep.subr.mxu0 %v307
  %480 = vmatpush1.msra.mxu0 %v306
  %481 = vmatprep.subr.mxu0 %v303
  %482 = vmatpush1.msra.mxu0 %v302
  %483 = vmatprep.subr.mxu0 %v299
  %484 = vmatpush1.msra.mxu0 %v298
  %485 = vmatprep.subr.mxu0 0.0
  %486 = vmatpush2.msra.mxu0 0.0
  %487 = vmatprep.subr.mxu0 0.0
  %488 = vmatpush2.msra.mxu0 0.0
  %489 = vmatprep.subr.mxu0 0.0
  %490 = vmatpush2.msra.mxu0 0.0
  %491 = vmatprep.subr.mxu0 0.0
  %492 = vmatpush2.msra.mxu0 0.0
  %493 = vmatprep.subr.mxu0 0.0
  %494 = vmatpush2.msra.mxu0 0.0
  %495 = vmatprep.subr.mxu0 0.0
  %496 = vmatpush2.msra.mxu0 0.0
  %497 = vmatprep.subr.mxu0 0.0
  %498 = vmatpush2.msra.mxu0 0.0
  %499 = vmatprep.subr.mxu0 0.0
  %500 = vmatpush2.msra.mxu0 0.0
  %501 = vmatprep.subr.mxu0 0.0
  %502 = vmatpush2.msra.mxu0 0.0
  %503 = vmatprep.subr.mxu0 0.0
  %504 = vmatpush2.msra.mxu0 0.0
  %505 = vmatprep.subr.mxu0 0.0
  %506 = vmatpush2.msra.mxu0 0.0
  %507 = vmatprep.subr.mxu0 0.0
  %508 = vmatpush2.msra.mxu0 0.0
  %509 = vmatprep.subr.mxu0 0.0
  %510 = vmatpush2.msra.mxu0 0.0
  %511 = vmatprep.subr.mxu0 0.0
  %512 = vmatpush2.msra.mxu0 0.0
  %513 = vmatprep.subr.mxu0 0.0
  %514 = vmatpush2.msra.mxu0 0.0
  %515 = vmatprep.subr.mxu0 0.0
  %516 = vmatpush2.msra.mxu0 0.0
  %517 = vmatprep.mubr.f32.mxu0 0.0
  %518 = vmatmul.mubr.f32.gmra.mxu0 %v295
  %v519 = vpop.f32.mrf.mxu0
  %v520 = vadd.f32 %v373, %v519
  %v521 = vpop.f32.mrf.mxu0
  %v522 = vadd.f32 %v377, %v521
  %523 = vdwg.mxu0
  %v524 = vtanh.pop %v449
  %v525 = vtanh.pop %v451
  %v526 = vtanh.pop %v520
  %v527 = vtanh.pop %v522
  %528 = vst [vmem:[#allocation2] sm:$0xff] %v524
  %529 = vst [vmem:[#allocation2 + $0x8] sm:$0xff] %v525
  %530 = vst [vmem:[#allocation2 + $0x10] sm:$0xff] %v526
  %531 = vst [vmem:[#allocation2 + $0x18] sm:$0xff] %v527
  %v532 = vld [vmem:[#allocation2] sm:$0xff]
  %v533 = vld [vmem:[%s1] sm:$0xff]
  %535 = vset.pattern.permute.xlu0 0
  %536 = vperm.xlu0 %535, %v533
  %v537 = vpop.permute.xlu0 %536
  %v539 = vmul.f32 %v537, %v532
  %541 = vrot.lane.b32.xlu0 %v539, 112
  %v542 = vpop.permute.xlu0 %541
  %v544 = vadd.f32 %v532, %v542
  %545 = vset.pattern.permute.xlu0 1
  %546 = vperm.xlu0 %545, %v533
  %v547 = vpop.permute.xlu0 %546
  %v549 = vmul.f32 %v547, %v532
  %551 = vrot.lane.b32.xlu0 %v549, 96
  %v552 = vpop.permute.xlu0 %551
  %v554 = vadd.f32 %v544, %v552
  %555 = vset.pattern.permute.xlu0 2
  %556 = vperm.xlu0 %555, %v533
  %v557 = vpop.permute.xlu0 %556
  %v559 = vmul.f32 %v557, %v532
  %561 = vrot.lane.b32.xlu0 %v559, 80
  %v562 = vpop.permute.xlu0 %561
  %v564 = vadd.f32 %v554, %v562
  %565 = vset.pattern.permute.xlu0 3
  %566 = vperm.xlu0 %565, %v533
  %v567 = vpop.permute.xlu0 %566
  %v569 = vmul.f32 %v567, %v532
  %571 = vrot.lane.b32.xlu0 %v569, 64
  %v572 = vpop.permute.xlu0 %571
  %v574 = vadd.f32 %v564, %v572
  %575 = vset.pattern.permute.xlu0 4
  %576 = vperm.xlu0 %575, %v533
  %v577 = vpop.permute.xlu0 %576
  %v579 = vmul.f32 %v577, %v532
  %581 = vrot.lane.b32.xlu0 %v579, 48
  %v582 = vpop.permute.xlu0 %581
  %v584 = vadd.f32 %v574, %v582
  %585 = vset.pattern.permute.xlu0 5
  %586 = vperm.xlu0 %585, %v533
  %v587 = vpop.permute.xlu0 %586
  %v589 = vmul.f32 %v587, %v532
  %591 = vrot.lane.b32.xlu0 %v589, 32
  %v592 = vpop.permute.xlu0 %591
  %v594 = vadd.f32 %v584, %v592
  %595 = vset.pattern.permute.xlu0 6
  %596 = vperm.xlu0 %595, %v533
  %v597 = vpop.permute.xlu0 %596
  %v599 = vmul.f32 %v597, %v532
  %601 = vrot.lane.b32.xlu0 %v599, 16
  %v602 = vpop.permute.xlu0 %601
  %v604 = vadd.f32 %v594, %v602
  %v605 = vld [vmem:[#allocation2 + $0x8] sm:$0xff]
  %606 = vset.pattern.permute.xlu0 7
  %607 = vperm.xlu0 %606, %v533
  %v608 = vpop.permute.xlu0 %607
  %v610 = vmul.f32 %v608, %v605
  %v611 = vadd.f32 %v604, %v610
  %v612 = vtanh.pop %v611
  %614 = vset.pattern.permute.xlu0 0
  %615 = vperm.xlu0 %614, %v612
  %v616 = vpop.permute.xlu0 %615
  %v618 = vmul.f32 %v616, %v605
  %620 = vrot.lane.b32.xlu0 %v618, 112
  %v621 = vpop.permute.xlu0 %620
  %v623 = vadd.f32 %v605, %v621
  %624 = vset.pattern.permute.xlu0 1
  %625 = vperm.xlu0 %624, %v612
  %v626 = vpop.permute.xlu0 %625
  %v628 = vmul.f32 %v626, %v605
  %630 = vrot.lane.b32.xlu0 %v628, 96
  %v631 = vpop.permute.xlu0 %630
  %v633 = vadd.f32 %v623, %v631
  %634 = vset.pattern.permute.xlu0 2
  %635 = vperm.xlu0 %634, %v612
  %v636 = vpop.permute.xlu0 %635
  %v638 = vmul.f32 %v636, %v605
  %640 = vrot.lane.b32.xlu0 %v638, 80
  %v641 = vpop.permute.xlu0 %640
  %v643 = vadd.f32 %v633, %v641
  %644 = vset.pattern.permute.xlu0 3
  %645 = vperm.xlu0 %644, %v612
  %v646 = vpop.permute.xlu0 %645
  %v648 = vmul.f32 %v646, %v605
  %650 = vrot.lane.b32.xlu0 %v648, 64
  %v651 = vpop.permute.xlu0 %650
  %v653 = vadd.f32 %v643, %v651
  %654 = vset.pattern.permute.xlu0 4
  %655 = vperm.xlu0 %654, %v612
  %v656 = vpop.permute.xlu0 %655
  %v658 = vmul.f32 %v656, %v605
  %660 = vrot.lane.b32.xlu0 %v658, 48
  %v661 = vpop.permute.xlu0 %660
  %v663 = vadd.f32 %v653, %v661
  %664 = vset.pattern.permute.xlu0 5
  %665 = vperm.xlu0 %664, %v612
  %v666 = vpop.permute.xlu0 %665
  %v668 = vmul.f32 %v666, %v605
  %670 = vrot.lane.b32.xlu0 %v668, 32
  %v671 = vpop.permute.xlu0 %670
  %v673 = vadd.f32 %v663, %v671
  %v674 = vld [vmem:[#allocation2 + $0x10] sm:$0xff]
  %675 = vset.pattern.permute.xlu0 6
  %676 = vperm.xlu0 %675, %v612
  %v677 = vpop.permute.xlu0 %676
  %v679 = vmul.f32 %v677, %v674
  %681 = vrot.lane.b32.xlu0 %v679, 16
  %v682 = vpop.permute.xlu0 %681
  %v684 = vadd.f32 %v673, %v682
  %685 = vset.pattern.permute.xlu0 7
  %686 = vperm.xlu0 %685, %v612
  %v687 = vpop.permute.xlu0 %686
  %v689 = vmul.f32 %v687, %v674
  %v690 = vadd.f32 %v684, %v689
  %691 = vset.pattern.permute.xlu0 8
  %692 = vperm.xlu0 %691, %v612
  %v693 = vpop.permute.xlu0 %692
  %v695 = vmul.f32 %v693, %v674
  %697 = vrot.lane.b32.xlu0 %v695, 112
  %v698 = vpop.permute.xlu0 %697
  %v700 = vadd.f32 %v690, %v698
  %701 = vset.pattern.permute.xlu0 9
  %702 = vperm.xlu0 %701, %v612
  %v703 = vpop.permute.xlu0 %702
  %v705 = vmul.f32 %v703, %v674
  %707 = vrot.lane.b32.xlu0 %v705, 96
  %v708 = vpop.permute.xlu0 %707
  %v710 = vadd.f32 %v700, %v708
  %711 = vset.pattern.permute.xlu0 10
  %712 = vperm.xlu0 %711, %v612
  %v713 = vpop.permute.xlu0 %712
  %v715 = vmul.f32 %v713, %v674
  %717 = vrot.lane.b32.xlu0 %v715, 80
  %v718 = vpop.permute.xlu0 %717
  %v720 = vadd.f32 %v710, %v718
  %721 = vset.pattern.permute.xlu0 11
  %722 = vperm.xlu0 %721, %v612
  %v723 = vpop.permute.xlu0 %722
  %v725 = vmul.f32 %v723, %v674
  %727 = vrot.lane.b32.xlu0 %v725, 64
  %v728 = vpop.permute.xlu0 %727
  %v730 = vadd.f32 %v720, %v728
  %731 = vset.pattern.permute.xlu0 12
  %732 = vperm.xlu0 %731, %v612
  %v733 = vpop.permute.xlu0 %732
  %v735 = vmul.f32 %v733, %v674
  %737 = vrot.lane.b32.xlu0 %v735, 48
  %v738 = vpop.permute.xlu0 %737
  %v740 = vadd.f32 %v730, %v738
  %741 = vset.pattern.permute.xlu0 13
  %742 = vperm.xlu0 %741, %v612
  %v743 = vpop.permute.xlu0 %742
  %v745 = vmul.f32 %v743, %v674
  %747 = vrot.lane.b32.xlu0 %v745, 32
  %v748 = vpop.permute.xlu0 %747
  %v750 = vadd.f32 %v740, %v748
  %v751 = vld [vmem:[#allocation2 + $0x18] sm:$0xff]
  %752 = vset.pattern.permute.xlu0 14
  %753 = vperm.xlu0 %752, %v612
  %v754 = vpop.permute.xlu0 %753
  %v756 = vmul.f32 %v754, %v751
  %758 = vrot.lane.b32.xlu0 %v756, 16
  %v759 = vpop.permute.xlu0 %758
  %v761 = vadd.f32 %v750, %v759
  %762 = vset.pattern.permute.xlu0 15
  %763 = vperm.xlu0 %762, %v612
  %v764 = vpop.permute.xlu0 %763
  %v766 = vmul.f32 %v764, %v751
  %v767 = vadd.f32 %v761, %v766
  %v768 = vtanh.pop %v767
  %770 = vset.pattern.permute.xlu0 16
  %771 = vperm.xlu0 %770, %v768
  %v772 = vpop.permute.xlu0 %771
  %v774 = vmul.f32 %v772, %v751
  %776 = vrot.lane.b32.xlu0 %v774, 124
  %v777 = vpop.permute.xlu0 %776
  %v779 = vadd.f32 %v751, %v777
  %780 = vset.pattern.permute.xlu0 17
  %781 = vperm.xlu0 %780, %v768
  %v782 = vpop.permute.xlu0 %781
  %v784 = vmul.f32 %v782, %v751
  %786 = vrot.lane.b32.xlu0 %v784, 120
  %v787 = vpop.permute.xlu0 %786
  %v789 = vadd.f32 %v779, %v787
  %790 = vset.pattern.permute.xlu0 18
  %791 = vperm.xlu0 %790, %v768
  %v792 = vpop.permute.xlu0 %791
  %v794 = vmul.f32 %v792, %v751
  %796 = vrot.lane.b32.xlu0 %v794, 116
  %v797 = vpop.permute.xlu0 %796
  %v799 = vadd.f32 %v789, %v797
  %800 = vset.pattern.permute.xlu0 19
  %801 = vperm.xlu0 %800, %v768
  %v802 = vpop.permute.xlu0 %801
  %v804 = vmul.f32 %v802, %v751
  %806 = vrot.lane.b32.xlu0 %v804, 112
  %v807 = vpop.permute.xlu0 %806
  %v809 = vadd.f32 %v799, %v807
  %810 = vset.pattern.permute.xlu0 20
  %811 = vperm.xlu0 %810, %v768
  %v812 = vpop.permute.xlu0 %811
  %v814 = vmul.f32 %v812, %v751
  %816 = vrot.lane.b32.xlu0 %v814, 108
  %v817 = vpop.permute.xlu0 %816
  %v819 = vadd.f32 %v809, %v817
  %820 = vset.pattern.permute.xlu0 21
  %821 = vperm.xlu0 %820, %v768
  %v822 = vpop.permute.xlu0 %821
  %v824 = vmul.f32 %v822, %v751
  %826 = vrot.lane.b32.xlu0 %v824, 104
  %v827 = vpop.permute.xlu0 %826
  %v829 = vadd.f32 %v819, %v827
  %830 = vset.pattern.permute.xlu0 22
  %831 = vperm.xlu0 %830, %v768
  %v832 = vpop.permute.xlu0 %831
  %v834 = vmul.f32 %v832, %v751
  %836 = vrot.lane.b32.xlu0 %v834, 100
  %v837 = vpop.permute.xlu0 %836
  %v839 = vadd.f32 %v829, %v837
  %840 = vset.pattern.permute.xlu0 23
  %841 = vperm.xlu0 %840, %v768
  %v842 = vpop.permute.xlu0 %841
  %v844 = vmul.f32 %v842, %v751
  %846 = vrot.lane.b32.xlu0 %v844, 96
  %v847 = vpop.permute.xlu0 %846
  %v849 = vadd.f32 %v839, %v847
  %850 = vset.pattern.permute.xlu0 24
  %851 = vperm.xlu0 %850, %v768
  %v852 = vpop.permute.xlu0 %851
  %v854 = vmul.f32 %v852, %v751
  %856 = vrot.lane.b32.xlu0 %v854, 92
  %v857 = vpop.permute.xlu0 %856
  %v859 = vadd.f32 %v849, %v857
  %860 = vset.pattern.permute.xlu0 25
  %861 = vperm.xlu0 %860, %v768
  %v862 = vpop.permute.xlu0 %861
  %v864 = vmul.f32 %v862, %v751
  %866 = vrot.lane.b32.xlu0 %v864, 88
  %v867 = vpop.permute.xlu0 %866
  %v869 = vadd.f32 %v859, %v867
  %870 = vset.pattern.permute.xlu0 26
  %871 = vperm.xlu0 %870, %v768
  %v872 = vpop.permute.xlu0 %871
  %v874 = vmul.f32 %v872, %v751
  %876 = vrot.lane.b32.xlu0 %v874, 84
  %v877 = vpop.permute.xlu0 %876
  %v879 = vadd.f32 %v869, %v877
  %880 = vset.pattern.permute.xlu0 27
  %881 = vperm.xlu0 %880, %v768
  %v882 = vpop.permute.xlu0 %881
  %v884 = vmul.f32 %v882, %v751
  %886 = vrot.lane.b32.xlu0 %v884, 80
  %v887 = vpop.permute.xlu0 %886
  %v889 = vadd.f32 %v879, %v887
  %890 = vset.pattern.permute.xlu0 28
  %891 = vperm.xlu0 %890, %v768
  %v892 = vpop.permute.xlu0 %891
  %v894 = vmul.f32 %v892, %v751
  %896 = vrot.lane.b32.xlu0 %v894, 76
  %v897 = vpop.permute.xlu0 %896
  %v899 = vadd.f32 %v889, %v897
  %900 = vset.pattern.permute.xlu0 29
  %901 = vperm.xlu0 %900, %v768
  %v902 = vpop.permute.xlu0 %901
  %v904 = vmul.f32 %v902, %v751
  %906 = vrot.lane.b32.xlu0 %v904, 72
  %v907 = vpop.permute.xlu0 %906
  %v909 = vadd.f32 %v899, %v907
  %910 = vset.pattern.permute.xlu0 30
  %911 = vperm.xlu0 %910, %v768
  %v912 = vpop.permute.xlu0 %911
  %v914 = vmul.f32 %v912, %v751
  %916 = vrot.lane.b32.xlu0 %v914, 68
  %v917 = vpop.permute.xlu0 %916
  %v919 = vadd.f32 %v909, %v917
  %920 = vset.pattern.permute.xlu0 31
  %921 = vperm.xlu0 %920, %v768
  %v922 = vpop.permute.xlu0 %921
  %v924 = vmul.f32 %v922, %v751
  %926 = vrot.lane.b32.xlu0 %v924, 64
  %v927 = vpop.permute.xlu0 %926
  %v929 = vadd.f32 %v919, %v927
  %931 = vrot.lane.b32.xlu0 %v929, 96
  %v932 = vpop.permute.xlu0 %931
  %vm934 = vcmask 31744
  %935 = vst.msk [vmem:[%s10] sm:$0xff] %vm934, %v932
  // Predicated region
  $region42: #{actor_critic_forward.1} parent=0 // pred_check
    _
  $region43: #{actor_critic_forward.1} parent=0 // pred_check_branch
    %937 = sbr.rel (0) target = $region45
  $region44: #{actor_critic_forward.1} parent=0 // pred_region
    _
  $region45: #{actor_critic_forward.1} parent=0 // pred_fallthru
    _
  // Predicated region
  $region46: #{actor_critic_forward.1} parent=0 // pred_check
    _
  $region47: #{actor_critic_forward.1} parent=0 // pred_check_branch
    %939 = sbr.rel (0) target = $region49
  $region48: #{actor_critic_forward.1} parent=0 // pred_region
    _
  $region49: #{actor_critic_forward.1} parent=0 // pred_fallthru
    _

</llo_original>
